<compile_context>
chip_gen: v6e
topology: v6e:2x2x1
jax: 0.10.0
libtpu: 0.0.40
codegen_flags: <defaults>
</compile_context>

<pallas_src>
import functools

import numpy as np
import jax
import jax.numpy as jnp
from jax import lax
from jax.experimental import pallas as pl
from jax.experimental.pallas import tpu as pltpu


def _conv2d_same_kernel(x_ref, w_ref, mask_ref, o_ref, *, H, W, K, Cin, Cout,
                        pad, nb):
    """One grid step = `nb` images.

    x_ref    : (nb, Cin, H*W)   lane-dense NCHW input block (VMEM, f32)
    w_ref    : (Cout, K*K*Cin)  weights, columns ordered (dy, dx, ci) (bf16)
    mask_ref : (K*K, H*W)       precomputed 0/1 'same'-padding border masks
    o_ref    : (nb, Cout, H*W)  lane-dense output block
    """
    HW = H * W
    mask = mask_ref[...]                                    # (K*K, HW)
    imgs = [x_ref[n] for n in range(nb)]                    # nb x (Cin, HW)

    # roll+mask im2col: one XLU lane-rotate + one VPU multiply per tap/image.
    # Every read/write is full-128-lane; no padded scratch, no reshapes.
    slabs = []
    for dy in range(K):
        for dx in range(K):
            t = dy * K + dx
            off = (dy - pad) * W + (dx - pad)               # flat source offset
            shift = (-off) % HW                             # jnp.roll convention
            m = mask[t:t + 1, :]                            # (1, HW)
            per_img = [pltpu.roll(img, shift, axis=1) * m for img in imgs]
            slab = per_img[0] if nb == 1 else jnp.concatenate(per_img, axis=1)
            slabs.append(slab)                              # (Cin, nb*HW)

    # Patch matrix lives in vregs; cast once to bf16 for the MXU.
    patch = slabs[0] if len(slabs) == 1 else jnp.concatenate(slabs, axis=0)
    patch = patch.astype(jnp.bfloat16)                      # (K*K*Cin, nb*HW)

    # Single MXU matmul per grid step, f32 accumulation.
    out = jnp.dot(w_ref[...], patch,
                  preferred_element_type=jnp.float32)       # (Cout, nb*HW)

    # Per-image, lane-dense (Cout, 256) stores; output is already NCHW.
    for n in range(nb):
        o_ref[n] = out[:, n * HW:(n + 1) * HW].astype(o_ref.dtype)


def _border_masks(H, W, K, pad):
    """0/1 masks (K*K, H*W): which output pixels see a valid (in-bounds) tap."""
    yy = np.arange(H).reshape(H, 1)
    xx = np.arange(W).reshape(1, W)
    rows = []
    for dy in range(K):
        for dx in range(K):
            oy, ox = dy - pad, dx - pad
            valid = ((yy + oy >= 0) & (yy + oy < H)
                     & (xx + ox >= 0) & (xx + ox < W))
            rows.append(valid.reshape(H * W))
    return np.stack(rows, axis=0).astype(np.float32)


def spatial_rf_forward(x_nchw, weight_oihw, *, images_per_step=None):
    """Conv2d(bias=False, stride=1, padding='same') forward.

    x_nchw      : (N, Cin, H, W)   -- PyTorch NCHW convention
    weight_oihw : (Cout, Cin, K, K)
    returns     : (N, Cout, H, W)
    """
    N, Cin, H, W = x_nchw.shape
    Cout, Cin_w, K, K2 = weight_oihw.shape
    assert Cin == Cin_w and K == K2
    assert K % 2 == 1, "padding='same' with symmetric pad needs odd kernel"
    pad = K // 2
    HW = H * W

    # Images per grid step: 2 by default (amortizes per-step overhead and the
    # weight push on single-TC v5e/v6e, and keeps a 'parallel' batch axis for
    # v7x megacore once N >= 4).
    if images_per_step is None:
        images_per_step = 2 if (N % 2 == 0 and N >= 2) else 1
    nb = images_per_step
    assert N % nb == 0, "batch must be divisible by images_per_step"
    grid_n = N // nb

    # Lane-dense input: (N, Cin, H*W) has the same HBM layout as NCHW (free).
    x_flat = x_nchw.reshape(N, Cin, HW)

    # (Cout, Cin, K, K) -> (Cout, K, K, Cin) -> (Cout, K*K*Cin); column order
    # (dy, dx, ci) matches the kernel's patch row order.  bf16 for the MXU.
    w_mat = jnp.transpose(weight_oihw, (0, 2, 3, 1)).reshape(
        Cout, K * K * Cin).astype(jnp.bfloat16)

    # Precomputed border masks, resident in VMEM across the whole grid.
    mask = jnp.asarray(_border_masks(H, W, K, pad))          # (K*K, HW) f32

    kernel = functools.partial(_conv2d_same_kernel, H=H, W=W, K=K,
                               Cin=Cin, Cout=Cout, pad=pad, nb=nb)

    out = pl.pallas_call(
        kernel,
        out_shape=jax.ShapeDtypeStruct((N, Cout, HW), x_nchw.dtype),
        grid_spec=pltpu.PrefetchScalarGridSpec(
            num_scalar_prefetch=0,
            grid=(grid_n,),
            in_specs=[
                pl.BlockSpec((nb, Cin, HW), lambda i: (i, 0, 0)),
                pl.BlockSpec((Cout, K * K * Cin), lambda i: (0, 0)),
                pl.BlockSpec((K * K, HW), lambda i: (0, 0)),
            ],
            out_specs=pl.BlockSpec((nb, Cout, HW), lambda i: (i, 0, 0)),
        ),
        compiler_params=pltpu.CompilerParams(
            dimension_semantics=("parallel",)),
    )(x_flat, w_mat, mask)

    # (N, Cout, H*W) and (N, Cout, H, W) share the same row-major HBM layout,
    # so this reshape is free and the output is already NCHW (no transpose).
    return out.reshape(N, Cout, H, W)


if __name__ == "__main__":
    # Small shapes consistent with the module: batch=2, channels_in=4,
    # channels_out=8, spatial=16x16, kernel_size=5.
    N, Cin, Cout, H, W, K = 2, 4, 8, 16, 16, 5

    key = jax.random.PRNGKey(0)
    kx, kw = jax.random.split(key)
    x = jax.random.normal(kx, (N, Cin, H, W), dtype=jnp.float32)
    # Deterministic synthetic weights standing in for the norse receptive-field
    # init ('rf' scheme): shape matches Conv2d.weight = (Cout, Cin, K, K).
    # TODO(synk): norse.spatial_receptive_fields_with_derivatives not ported;
    # weights are deterministic random instead of Gaussian-derivative RFs.
    weight = 0.1 * jax.random.normal(kw, (Cout, Cin, K, K), dtype=jnp.float32)

    out = spatial_rf_forward(x, weight)
    out = jax.block_until_ready(out)
    assert out.shape == (N, Cout, H, W)

    # Reference 1: same bf16 input rounding the MXU sees, f32 accumulation.
    xb = x.astype(jnp.bfloat16).astype(jnp.float32)
    wb = weight.astype(jnp.bfloat16).astype(jnp.float32)
    ref_bf16 = lax.conv_general_dilated(
        xb, wb, window_strides=(1, 1), padding="SAME",
        dimension_numbers=("NCHW", "OIHW", "NCHW"))
    assert jnp.allclose(out, ref_bf16, atol=2e-3, rtol=2e-3), \
        float(jnp.max(jnp.abs(out - ref_bf16)))

    # Reference 2: full-f32 conv (loose tolerance — bf16 MXU inputs).
    ref_f32 = lax.conv_general_dilated(
        x, weight, window_strides=(1, 1), padding="SAME",
        dimension_numbers=("NCHW", "OIHW", "NCHW"))
    assert jnp.allclose(out, ref_f32, atol=1e-1, rtol=1e-1), \
        float(jnp.max(jnp.abs(out - ref_f32)))

    print("KERNEL_OK")
</pallas_src>

<mosaic_0001>
module attributes {stable_mosaic.version = 11 : i64} {
  func.func @_conv2d_same_kernel(%arg0: i32, %arg1: memref<2x4x256xf32, #tpu.memory_space<vmem>>, %arg2: memref<8x100xbf16, #tpu.memory_space<vmem>>, %arg3: memref<25x256xf32, #tpu.memory_space<vmem>>, %arg4: memref<2x8x256xf32, #tpu.memory_space<vmem>>) attributes {dimension_semantics = [#tpu.dimension_semantics<parallel>], iteration_bounds = array<i64: 1>, scalar_prefetch = 0 : i64, scratch_operands = 0 : i64, tpu.core_type = #tpu.core_type<tc>, window_params = [{transform_indices = @transform_0, window_bounds = array<i64: 2, 4, 256>}, {pipeline_mode = #tpu.pipeline_mode<synchronous>, transform_indices = @transform_1, window_bounds = array<i64: 8, 100>}, {pipeline_mode = #tpu.pipeline_mode<synchronous>, transform_indices = @transform_2, window_bounds = array<i64: 25, 256>}, {transform_indices = @transform_3, window_bounds = array<i64: 2, 8, 256>}]} {
    %c0 = arith.constant 0 : index
    %c0_0 = arith.constant 0 : index
    %0 = vector.load %arg3[%c0, %c0_0] : memref<25x256xf32, #tpu.memory_space<vmem>>, vector<25x256xf32>
    %c0_1 = arith.constant 0 : index
    %c0_2 = arith.constant 0 : index
    %c0_3 = arith.constant 0 : index
    %1 = vector.load %arg1[%c0_1, %c0_2, %c0_3] : memref<2x4x256xf32, #tpu.memory_space<vmem>>, vector<1x4x256xf32>
    %2 = vector.shape_cast %1 : vector<1x4x256xf32> to vector<4x256xf32>
    %c1 = arith.constant 1 : index
    %c0_4 = arith.constant 0 : index
    %c0_5 = arith.constant 0 : index
    %3 = vector.load %arg1[%c1, %c0_4, %c0_5] : memref<2x4x256xf32, #tpu.memory_space<vmem>>, vector<1x4x256xf32>
    %4 = vector.shape_cast %3 : vector<1x4x256xf32> to vector<4x256xf32>
    %5 = vector.extract_strided_slice %0 {offsets = [0, 0], sizes = [1, 256], strides = [1, 1]} : vector<25x256xf32> to vector<1x256xf32>
    %c34_i32 = arith.constant 34 : i32
    %6 = tpu.dynamic_rotate %2 by %c34_i32 dim 1 : vector<4x256xf32>, i32 -> vector<4x256xf32>
    %7 = vector.broadcast %5 : vector<1x256xf32> to vector<4x256xf32>
    %8 = arith.mulf %6, %7 : vector<4x256xf32>
    %c34_i32_6 = arith.constant 34 : i32
    %9 = tpu.dynamic_rotate %4 by %c34_i32_6 dim 1 : vector<4x256xf32>, i32 -> vector<4x256xf32>
    %10 = vector.broadcast %5 : vector<1x256xf32> to vector<4x256xf32>
    %11 = arith.mulf %9, %10 : vector<4x256xf32>
    %12 = tpu.concatenate %8, %11 in 1 : vector<4x256xf32>, vector<4x256xf32> -> vector<4x512xf32>
    %13 = vector.extract_strided_slice %0 {offsets = [1, 0], sizes = [1, 256], strides = [1, 1]} : vector<25x256xf32> to vector<1x256xf32>
    %c33_i32 = arith.constant 33 : i32
    %14 = tpu.dynamic_rotate %2 by %c33_i32 dim 1 : vector<4x256xf32>, i32 -> vector<4x256xf32>
    %15 = vector.broadcast %13 : vector<1x256xf32> to vector<4x256xf32>
    %16 = arith.mulf %14, %15 : vector<4x256xf32>
    %c33_i32_7 = arith.constant 33 : i32
    %17 = tpu.dynamic_rotate %4 by %c33_i32_7 dim 1 : vector<4x256xf32>, i32 -> vector<4x256xf32>
    %18 = vector.broadcast %13 : vector<1x256xf32> to vector<4x256xf32>
    %19 = arith.mulf %17, %18 : vector<4x256xf32>
    %20 = tpu.concatenate %16, %19 in 1 : vector<4x256xf32>, vector<4x256xf32> -> vector<4x512xf32>
    %21 = vector.extract_strided_slice %0 {offsets = [2, 0], sizes = [1, 256], strides = [1, 1]} : vector<25x256xf32> to vector<1x256xf32>
    %c32_i32 = arith.constant 32 : i32
    %22 = tpu.dynamic_rotate %2 by %c32_i32 dim 1 : vector<4x256xf32>, i32 -> vector<4x256xf32>
    %23 = vector.broadcast %21 : vector<1x256xf32> to vector<4x256xf32>
    %24 = arith.mulf %22, %23 : vector<4x256xf32>
    %c32_i32_8 = arith.constant 32 : i32
    %25 = tpu.dynamic_rotate %4 by %c32_i32_8 dim 1 : vector<4x256xf32>, i32 -> vector<4x256xf32>
    %26 = vector.broadcast %21 : vector<1x256xf32> to vector<4x256xf32>
    %27 = arith.mulf %25, %26 : vector<4x256xf32>
    %28 = tpu.concatenate %24, %27 in 1 : vector<4x256xf32>, vector<4x256xf32> -> vector<4x512xf32>
    %29 = vector.extract_strided_slice %0 {offsets = [3, 0], sizes = [1, 256], strides = [1, 1]} : vector<25x256xf32> to vector<1x256xf32>
    %c31_i32 = arith.constant 31 : i32
    %30 = tpu.dynamic_rotate %2 by %c31_i32 dim 1 : vector<4x256xf32>, i32 -> vector<4x256xf32>
    %31 = vector.broadcast %29 : vector<1x256xf32> to vector<4x256xf32>
    %32 = arith.mulf %30, %31 : vector<4x256xf32>
    %c31_i32_9 = arith.constant 31 : i32
    %33 = tpu.dynamic_rotate %4 by %c31_i32_9 dim 1 : vector<4x256xf32>, i32 -> vector<4x256xf32>
    %34 = vector.broadcast %29 : vector<1x256xf32> to vector<4x256xf32>
    %35 = arith.mulf %33, %34 : vector<4x256xf32>
    %36 = tpu.concatenate %32, %35 in 1 : vector<4x256xf32>, vector<4x256xf32> -> vector<4x512xf32>
    %37 = vector.extract_strided_slice %0 {offsets = [4, 0], sizes = [1, 256], strides = [1, 1]} : vector<25x256xf32> to vector<1x256xf32>
    %c30_i32 = arith.constant 30 : i32
    %38 = tpu.dynamic_rotate %2 by %c30_i32 dim 1 : vector<4x256xf32>, i32 -> vector<4x256xf32>
    %39 = vector.broadcast %37 : vector<1x256xf32> to vector<4x256xf32>
    %40 = arith.mulf %38, %39 : vector<4x256xf32>
    %c30_i32_10 = arith.constant 30 : i32
    %41 = tpu.dynamic_rotate %4 by %c30_i32_10 dim 1 : vector<4x256xf32>, i32 -> vector<4x256xf32>
    %42 = vector.broadcast %37 : vector<1x256xf32> to vector<4x256xf32>
    %43 = arith.mulf %41, %42 : vector<4x256xf32>
    %44 = tpu.concatenate %40, %43 in 1 : vector<4x256xf32>, vector<4x256xf32> -> vector<4x512xf32>
    %45 = vector.extract_strided_slice %0 {offsets = [5, 0], sizes = [1, 256], strides = [1, 1]} : vector<25x256xf32> to vector<1x256xf32>
    %c18_i32 = arith.constant 18 : i32
    %46 = tpu.dynamic_rotate %2 by %c18_i32 dim 1 : vector<4x256xf32>, i32 -> vector<4x256xf32>
    %47 = vector.broadcast %45 : vector<1x256xf32> to vector<4x256xf32>
    %48 = arith.mulf %46, %47 : vector<4x256xf32>
    %c18_i32_11 = arith.constant 18 : i32
    %49 = tpu.dynamic_rotate %4 by %c18_i32_11 dim 1 : vector<4x256xf32>, i32 -> vector<4x256xf32>
    %50 = vector.broadcast %45 : vector<1x256xf32> to vector<4x256xf32>
    %51 = arith.mulf %49, %50 : vector<4x256xf32>
    %52 = tpu.concatenate %48, %51 in 1 : vector<4x256xf32>, vector<4x256xf32> -> vector<4x512xf32>
    %53 = vector.extract_strided_slice %0 {offsets = [6, 0], sizes = [1, 256], strides = [1, 1]} : vector<25x256xf32> to vector<1x256xf32>
    %c17_i32 = arith.constant 17 : i32
    %54 = tpu.dynamic_rotate %2 by %c17_i32 dim 1 : vector<4x256xf32>, i32 -> vector<4x256xf32>
    %55 = vector.broadcast %53 : vector<1x256xf32> to vector<4x256xf32>
    %56 = arith.mulf %54, %55 : vector<4x256xf32>
    %c17_i32_12 = arith.constant 17 : i32
    %57 = tpu.dynamic_rotate %4 by %c17_i32_12 dim 1 : vector<4x256xf32>, i32 -> vector<4x256xf32>
    %58 = vector.broadcast %53 : vector<1x256xf32> to vector<4x256xf32>
    %59 = arith.mulf %57, %58 : vector<4x256xf32>
    %60 = tpu.concatenate %56, %59 in 1 : vector<4x256xf32>, vector<4x256xf32> -> vector<4x512xf32>
    %61 = vector.extract_strided_slice %0 {offsets = [7, 0], sizes = [1, 256], strides = [1, 1]} : vector<25x256xf32> to vector<1x256xf32>
    %c16_i32 = arith.constant 16 : i32
    %62 = tpu.dynamic_rotate %2 by %c16_i32 dim 1 : vector<4x256xf32>, i32 -> vector<4x256xf32>
    %63 = vector.broadcast %61 : vector<1x256xf32> to vector<4x256xf32>
    %64 = arith.mulf %62, %63 : vector<4x256xf32>
    %c16_i32_13 = arith.constant 16 : i32
    %65 = tpu.dynamic_rotate %4 by %c16_i32_13 dim 1 : vector<4x256xf32>, i32 -> vector<4x256xf32>
    %66 = vector.broadcast %61 : vector<1x256xf32> to vector<4x256xf32>
    %67 = arith.mulf %65, %66 : vector<4x256xf32>
    %68 = tpu.concatenate %64, %67 in 1 : vector<4x256xf32>, vector<4x256xf32> -> vector<4x512xf32>
    %69 = vector.extract_strided_slice %0 {offsets = [8, 0], sizes = [1, 256], strides = [1, 1]} : vector<25x256xf32> to vector<1x256xf32>
    %c15_i32 = arith.constant 15 : i32
    %70 = tpu.dynamic_rotate %2 by %c15_i32 dim 1 : vector<4x256xf32>, i32 -> vector<4x256xf32>
    %71 = vector.broadcast %69 : vector<1x256xf32> to vector<4x256xf32>
    %72 = arith.mulf %70, %71 : vector<4x256xf32>
    %c15_i32_14 = arith.constant 15 : i32
    %73 = tpu.dynamic_rotate %4 by %c15_i32_14 dim 1 : vector<4x256xf32>, i32 -> vector<4x256xf32>
    %74 = vector.broadcast %69 : vector<1x256xf32> to vector<4x256xf32>
    %75 = arith.mulf %73, %74 : vector<4x256xf32>
    %76 = tpu.concatenate %72, %75 in 1 : vector<4x256xf32>, vector<4x256xf32> -> vector<4x512xf32>
    %77 = vector.extract_strided_slice %0 {offsets = [9, 0], sizes = [1, 256], strides = [1, 1]} : vector<25x256xf32> to vector<1x256xf32>
    %c14_i32 = arith.constant 14 : i32
    %78 = tpu.dynamic_rotate %2 by %c14_i32 dim 1 : vector<4x256xf32>, i32 -> vector<4x256xf32>
    %79 = vector.broadcast %77 : vector<1x256xf32> to vector<4x256xf32>
    %80 = arith.mulf %78, %79 : vector<4x256xf32>
    %c14_i32_15 = arith.constant 14 : i32
    %81 = tpu.dynamic_rotate %4 by %c14_i32_15 dim 1 : vector<4x256xf32>, i32 -> vector<4x256xf32>
    %82 = vector.broadcast %77 : vector<1x256xf32> to vector<4x256xf32>
    %83 = arith.mulf %81, %82 : vector<4x256xf32>
    %84 = tpu.concatenate %80, %83 in 1 : vector<4x256xf32>, vector<4x256xf32> -> vector<4x512xf32>
    %85 = vector.extract_strided_slice %0 {offsets = [10, 0], sizes = [1, 256], strides = [1, 1]} : vector<25x256xf32> to vector<1x256xf32>
    %c2_i32 = arith.constant 2 : i32
    %86 = tpu.dynamic_rotate %2 by %c2_i32 dim 1 : vector<4x256xf32>, i32 -> vector<4x256xf32>
    %87 = vector.broadcast %85 : vector<1x256xf32> to vector<4x256xf32>
    %88 = arith.mulf %86, %87 : vector<4x256xf32>
    %c2_i32_16 = arith.constant 2 : i32
    %89 = tpu.dynamic_rotate %4 by %c2_i32_16 dim 1 : vector<4x256xf32>, i32 -> vector<4x256xf32>
    %90 = vector.broadcast %85 : vector<1x256xf32> to vector<4x256xf32>
    %91 = arith.mulf %89, %90 : vector<4x256xf32>
    %92 = tpu.concatenate %88, %91 in 1 : vector<4x256xf32>, vector<4x256xf32> -> vector<4x512xf32>
    %93 = vector.extract_strided_slice %0 {offsets = [11, 0], sizes = [1, 256], strides = [1, 1]} : vector<25x256xf32> to vector<1x256xf32>
    %c1_i32 = arith.constant 1 : i32
    %94 = tpu.dynamic_rotate %2 by %c1_i32 dim 1 : vector<4x256xf32>, i32 -> vector<4x256xf32>
    %95 = vector.broadcast %93 : vector<1x256xf32> to vector<4x256xf32>
    %96 = arith.mulf %94, %95 : vector<4x256xf32>
    %c1_i32_17 = arith.constant 1 : i32
    %97 = tpu.dynamic_rotate %4 by %c1_i32_17 dim 1 : vector<4x256xf32>, i32 -> vector<4x256xf32>
    %98 = vector.broadcast %93 : vector<1x256xf32> to vector<4x256xf32>
    %99 = arith.mulf %97, %98 : vector<4x256xf32>
    %100 = tpu.concatenate %96, %99 in 1 : vector<4x256xf32>, vector<4x256xf32> -> vector<4x512xf32>
    %101 = vector.extract_strided_slice %0 {offsets = [12, 0], sizes = [1, 256], strides = [1, 1]} : vector<25x256xf32> to vector<1x256xf32>
    %c0_i32 = arith.constant 0 : i32
    %102 = tpu.dynamic_rotate %2 by %c0_i32 dim 1 : vector<4x256xf32>, i32 -> vector<4x256xf32>
    %103 = vector.broadcast %101 : vector<1x256xf32> to vector<4x256xf32>
    %104 = arith.mulf %102, %103 : vector<4x256xf32>
    %c0_i32_18 = arith.constant 0 : i32
    %105 = tpu.dynamic_rotate %4 by %c0_i32_18 dim 1 : vector<4x256xf32>, i32 -> vector<4x256xf32>
    %106 = vector.broadcast %101 : vector<1x256xf32> to vector<4x256xf32>
    %107 = arith.mulf %105, %106 : vector<4x256xf32>
    %108 = tpu.concatenate %104, %107 in 1 : vector<4x256xf32>, vector<4x256xf32> -> vector<4x512xf32>
    %109 = vector.extract_strided_slice %0 {offsets = [13, 0], sizes = [1, 256], strides = [1, 1]} : vector<25x256xf32> to vector<1x256xf32>
    %c255_i32 = arith.constant 255 : i32
    %110 = tpu.dynamic_rotate %2 by %c255_i32 dim 1 : vector<4x256xf32>, i32 -> vector<4x256xf32>
    %111 = vector.broadcast %109 : vector<1x256xf32> to vector<4x256xf32>
    %112 = arith.mulf %110, %111 : vector<4x256xf32>
    %c255_i32_19 = arith.constant 255 : i32
    %113 = tpu.dynamic_rotate %4 by %c255_i32_19 dim 1 : vector<4x256xf32>, i32 -> vector<4x256xf32>
    %114 = vector.broadcast %109 : vector<1x256xf32> to vector<4x256xf32>
    %115 = arith.mulf %113, %114 : vector<4x256xf32>
    %116 = tpu.concatenate %112, %115 in 1 : vector<4x256xf32>, vector<4x256xf32> -> vector<4x512xf32>
    %117 = vector.extract_strided_slice %0 {offsets = [14, 0], sizes = [1, 256], strides = [1, 1]} : vector<25x256xf32> to vector<1x256xf32>
    %c254_i32 = arith.constant 254 : i32
    %118 = tpu.dynamic_rotate %2 by %c254_i32 dim 1 : vector<4x256xf32>, i32 -> vector<4x256xf32>
    %119 = vector.broadcast %117 : vector<1x256xf32> to vector<4x256xf32>
    %120 = arith.mulf %118, %119 : vector<4x256xf32>
    %c254_i32_20 = arith.constant 254 : i32
    %121 = tpu.dynamic_rotate %4 by %c254_i32_20 dim 1 : vector<4x256xf32>, i32 -> vector<4x256xf32>
    %122 = vector.broadcast %117 : vector<1x256xf32> to vector<4x256xf32>
    %123 = arith.mulf %121, %122 : vector<4x256xf32>
    %124 = tpu.concatenate %120, %123 in 1 : vector<4x256xf32>, vector<4x256xf32> -> vector<4x512xf32>
    %125 = vector.extract_strided_slice %0 {offsets = [15, 0], sizes = [1, 256], strides = [1, 1]} : vector<25x256xf32> to vector<1x256xf32>
    %c242_i32 = arith.constant 242 : i32
    %126 = tpu.dynamic_rotate %2 by %c242_i32 dim 1 : vector<4x256xf32>, i32 -> vector<4x256xf32>
    %127 = vector.broadcast %125 : vector<1x256xf32> to vector<4x256xf32>
    %128 = arith.mulf %126, %127 : vector<4x256xf32>
    %c242_i32_21 = arith.constant 242 : i32
    %129 = tpu.dynamic_rotate %4 by %c242_i32_21 dim 1 : vector<4x256xf32>, i32 -> vector<4x256xf32>
    %130 = vector.broadcast %125 : vector<1x256xf32> to vector<4x256xf32>
    %131 = arith.mulf %129, %130 : vector<4x256xf32>
    %132 = tpu.concatenate %128, %131 in 1 : vector<4x256xf32>, vector<4x256xf32> -> vector<4x512xf32>
    %133 = vector.extract_strided_slice %0 {offsets = [16, 0], sizes = [1, 256], strides = [1, 1]} : vector<25x256xf32> to vector<1x256xf32>
    %c241_i32 = arith.constant 241 : i32
    %134 = tpu.dynamic_rotate %2 by %c241_i32 dim 1 : vector<4x256xf32>, i32 -> vector<4x256xf32>
    %135 = vector.broadcast %133 : vector<1x256xf32> to vector<4x256xf32>
    %136 = arith.mulf %134, %135 : vector<4x256xf32>
    %c241_i32_22 = arith.constant 241 : i32
    %137 = tpu.dynamic_rotate %4 by %c241_i32_22 dim 1 : vector<4x256xf32>, i32 -> vector<4x256xf32>
    %138 = vector.broadcast %133 : vector<1x256xf32> to vector<4x256xf32>
    %139 = arith.mulf %137, %138 : vector<4x256xf32>
    %140 = tpu.concatenate %136, %139 in 1 : vector<4x256xf32>, vector<4x256xf32> -> vector<4x512xf32>
    %141 = vector.extract_strided_slice %0 {offsets = [17, 0], sizes = [1, 256], strides = [1, 1]} : vector<25x256xf32> to vector<1x256xf32>
    %c240_i32 = arith.constant 240 : i32
    %142 = tpu.dynamic_rotate %2 by %c240_i32 dim 1 : vector<4x256xf32>, i32 -> vector<4x256xf32>
    %143 = vector.broadcast %141 : vector<1x256xf32> to vector<4x256xf32>
    %144 = arith.mulf %142, %143 : vector<4x256xf32>
    %c240_i32_23 = arith.constant 240 : i32
    %145 = tpu.dynamic_rotate %4 by %c240_i32_23 dim 1 : vector<4x256xf32>, i32 -> vector<4x256xf32>
    %146 = vector.broadcast %141 : vector<1x256xf32> to vector<4x256xf32>
    %147 = arith.mulf %145, %146 : vector<4x256xf32>
    %148 = tpu.concatenate %144, %147 in 1 : vector<4x256xf32>, vector<4x256xf32> -> vector<4x512xf32>
    %149 = vector.extract_strided_slice %0 {offsets = [18, 0], sizes = [1, 256], strides = [1, 1]} : vector<25x256xf32> to vector<1x256xf32>
    %c239_i32 = arith.constant 239 : i32
    %150 = tpu.dynamic_rotate %2 by %c239_i32 dim 1 : vector<4x256xf32>, i32 -> vector<4x256xf32>
    %151 = vector.broadcast %149 : vector<1x256xf32> to vector<4x256xf32>
    %152 = arith.mulf %150, %151 : vector<4x256xf32>
    %c239_i32_24 = arith.constant 239 : i32
    %153 = tpu.dynamic_rotate %4 by %c239_i32_24 dim 1 : vector<4x256xf32>, i32 -> vector<4x256xf32>
    %154 = vector.broadcast %149 : vector<1x256xf32> to vector<4x256xf32>
    %155 = arith.mulf %153, %154 : vector<4x256xf32>
    %156 = tpu.concatenate %152, %155 in 1 : vector<4x256xf32>, vector<4x256xf32> -> vector<4x512xf32>
    %157 = vector.extract_strided_slice %0 {offsets = [19, 0], sizes = [1, 256], strides = [1, 1]} : vector<25x256xf32> to vector<1x256xf32>
    %c238_i32 = arith.constant 238 : i32
    %158 = tpu.dynamic_rotate %2 by %c238_i32 dim 1 : vector<4x256xf32>, i32 -> vector<4x256xf32>
    %159 = vector.broadcast %157 : vector<1x256xf32> to vector<4x256xf32>
    %160 = arith.mulf %158, %159 : vector<4x256xf32>
    %c238_i32_25 = arith.constant 238 : i32
    %161 = tpu.dynamic_rotate %4 by %c238_i32_25 dim 1 : vector<4x256xf32>, i32 -> vector<4x256xf32>
    %162 = vector.broadcast %157 : vector<1x256xf32> to vector<4x256xf32>
    %163 = arith.mulf %161, %162 : vector<4x256xf32>
    %164 = tpu.concatenate %160, %163 in 1 : vector<4x256xf32>, vector<4x256xf32> -> vector<4x512xf32>
    %165 = vector.extract_strided_slice %0 {offsets = [20, 0], sizes = [1, 256], strides = [1, 1]} : vector<25x256xf32> to vector<1x256xf32>
    %c226_i32 = arith.constant 226 : i32
    %166 = tpu.dynamic_rotate %2 by %c226_i32 dim 1 : vector<4x256xf32>, i32 -> vector<4x256xf32>
    %167 = vector.broadcast %165 : vector<1x256xf32> to vector<4x256xf32>
    %168 = arith.mulf %166, %167 : vector<4x256xf32>
    %c226_i32_26 = arith.constant 226 : i32
    %169 = tpu.dynamic_rotate %4 by %c226_i32_26 dim 1 : vector<4x256xf32>, i32 -> vector<4x256xf32>
    %170 = vector.broadcast %165 : vector<1x256xf32> to vector<4x256xf32>
    %171 = arith.mulf %169, %170 : vector<4x256xf32>
    %172 = tpu.concatenate %168, %171 in 1 : vector<4x256xf32>, vector<4x256xf32> -> vector<4x512xf32>
    %173 = vector.extract_strided_slice %0 {offsets = [21, 0], sizes = [1, 256], strides = [1, 1]} : vector<25x256xf32> to vector<1x256xf32>
    %c225_i32 = arith.constant 225 : i32
    %174 = tpu.dynamic_rotate %2 by %c225_i32 dim 1 : vector<4x256xf32>, i32 -> vector<4x256xf32>
    %175 = vector.broadcast %173 : vector<1x256xf32> to vector<4x256xf32>
    %176 = arith.mulf %174, %175 : vector<4x256xf32>
    %c225_i32_27 = arith.constant 225 : i32
    %177 = tpu.dynamic_rotate %4 by %c225_i32_27 dim 1 : vector<4x256xf32>, i32 -> vector<4x256xf32>
    %178 = vector.broadcast %173 : vector<1x256xf32> to vector<4x256xf32>
    %179 = arith.mulf %177, %178 : vector<4x256xf32>
    %180 = tpu.concatenate %176, %179 in 1 : vector<4x256xf32>, vector<4x256xf32> -> vector<4x512xf32>
    %181 = vector.extract_strided_slice %0 {offsets = [22, 0], sizes = [1, 256], strides = [1, 1]} : vector<25x256xf32> to vector<1x256xf32>
    %c224_i32 = arith.constant 224 : i32
    %182 = tpu.dynamic_rotate %2 by %c224_i32 dim 1 : vector<4x256xf32>, i32 -> vector<4x256xf32>
    %183 = vector.broadcast %181 : vector<1x256xf32> to vector<4x256xf32>
    %184 = arith.mulf %182, %183 : vector<4x256xf32>
    %c224_i32_28 = arith.constant 224 : i32
    %185 = tpu.dynamic_rotate %4 by %c224_i32_28 dim 1 : vector<4x256xf32>, i32 -> vector<4x256xf32>
    %186 = vector.broadcast %181 : vector<1x256xf32> to vector<4x256xf32>
    %187 = arith.mulf %185, %186 : vector<4x256xf32>
    %188 = tpu.concatenate %184, %187 in 1 : vector<4x256xf32>, vector<4x256xf32> -> vector<4x512xf32>
    %189 = vector.extract_strided_slice %0 {offsets = [23, 0], sizes = [1, 256], strides = [1, 1]} : vector<25x256xf32> to vector<1x256xf32>
    %c223_i32 = arith.constant 223 : i32
    %190 = tpu.dynamic_rotate %2 by %c223_i32 dim 1 : vector<4x256xf32>, i32 -> vector<4x256xf32>
    %191 = vector.broadcast %189 : vector<1x256xf32> to vector<4x256xf32>
    %192 = arith.mulf %190, %191 : vector<4x256xf32>
    %c223_i32_29 = arith.constant 223 : i32
    %193 = tpu.dynamic_rotate %4 by %c223_i32_29 dim 1 : vector<4x256xf32>, i32 -> vector<4x256xf32>
    %194 = vector.broadcast %189 : vector<1x256xf32> to vector<4x256xf32>
    %195 = arith.mulf %193, %194 : vector<4x256xf32>
    %196 = tpu.concatenate %192, %195 in 1 : vector<4x256xf32>, vector<4x256xf32> -> vector<4x512xf32>
    %197 = vector.extract_strided_slice %0 {offsets = [24, 0], sizes = [1, 256], strides = [1, 1]} : vector<25x256xf32> to vector<1x256xf32>
    %c222_i32 = arith.constant 222 : i32
    %198 = tpu.dynamic_rotate %2 by %c222_i32 dim 1 : vector<4x256xf32>, i32 -> vector<4x256xf32>
    %199 = vector.broadcast %197 : vector<1x256xf32> to vector<4x256xf32>
    %200 = arith.mulf %198, %199 : vector<4x256xf32>
    %c222_i32_30 = arith.constant 222 : i32
    %201 = tpu.dynamic_rotate %4 by %c222_i32_30 dim 1 : vector<4x256xf32>, i32 -> vector<4x256xf32>
    %202 = vector.broadcast %197 : vector<1x256xf32> to vector<4x256xf32>
    %203 = arith.mulf %201, %202 : vector<4x256xf32>
    %204 = tpu.concatenate %200, %203 in 1 : vector<4x256xf32>, vector<4x256xf32> -> vector<4x512xf32>
    %205 = tpu.concatenate %12, %20, %28, %36, %44, %52, %60, %68, %76, %84, %92, %100, %108, %116, %124, %132 in 0 : vector<4x512xf32>, vector<4x512xf32>, vector<4x512xf32>, vector<4x512xf32>, vector<4x512xf32>, vector<4x512xf32>, vector<4x512xf32>, vector<4x512xf32>, vector<4x512xf32>, vector<4x512xf32>, vector<4x512xf32>, vector<4x512xf32>, vector<4x512xf32>, vector<4x512xf32>, vector<4x512xf32>, vector<4x512xf32> -> vector<64x512xf32>
    %206 = tpu.concatenate %140, %148, %156, %164, %172, %180, %188, %196, %204 in 0 : vector<4x512xf32>, vector<4x512xf32>, vector<4x512xf32>, vector<4x512xf32>, vector<4x512xf32>, vector<4x512xf32>, vector<4x512xf32>, vector<4x512xf32>, vector<4x512xf32> -> vector<36x512xf32>
    %207 = tpu.concatenate %205, %206 in 0 : vector<64x512xf32>, vector<36x512xf32> -> vector<100x512xf32>
    %208 = arith.truncf %207 : vector<100x512xf32> to vector<100x512xbf16>
    %c0_31 = arith.constant 0 : index
    %c0_32 = arith.constant 0 : index
    %209 = vector.load %arg2[%c0_31, %c0_32] : memref<8x100xbf16, #tpu.memory_space<vmem>>, vector<8x100xbf16>
    %cst = arith.constant dense<0.000000e+00> : vector<8x512xf32>
    %210 = tpu.matmul %209, %208, %cst {dimension_numbers = #tpu.dot_dimension_numbers<[1], [0], [0], [1], [0, 0, 1, 1], [], []>} : vector<8x100xbf16>, vector<100x512xbf16>, vector<8x512xf32> -> vector<8x512xf32>
    %211 = vector.extract_strided_slice %210 {offsets = [0, 0], sizes = [8, 256], strides = [1, 1]} : vector<8x512xf32> to vector<8x256xf32>
    %c0_33 = arith.constant 0 : index
    %c0_34 = arith.constant 0 : index
    %c0_35 = arith.constant 0 : index
    %212 = vector.load %arg4[%c0_33, %c0_34, %c0_35] : memref<2x8x256xf32, #tpu.memory_space<vmem>>, vector<1x8x256xf32>
    %213 = vector.shape_cast %212 : vector<1x8x256xf32> to vector<8x256xf32>
    %214 = vector.shape_cast %211 : vector<8x256xf32> to vector<1x8x256xf32>
    tpu.vector_store %arg4[%c0_33, %c0_34, %c0_35], %214 {strides = array<i32>} : memref<2x8x256xf32, #tpu.memory_space<vmem>>, vector<1x8x256xf32>,
    %215 = vector.extract_strided_slice %210 {offsets = [0, 256], sizes = [8, 256], strides = [1, 1]} : vector<8x512xf32> to vector<8x256xf32>
    %c1_36 = arith.constant 1 : index
    %c0_37 = arith.constant 0 : index
    %c0_38 = arith.constant 0 : index
    %216 = vector.load %arg4[%c1_36, %c0_37, %c0_38] : memref<2x8x256xf32, #tpu.memory_space<vmem>>, vector<1x8x256xf32>
    %217 = vector.shape_cast %216 : vector<1x8x256xf32> to vector<8x256xf32>
    %218 = vector.shape_cast %215 : vector<8x256xf32> to vector<1x8x256xf32>
    tpu.vector_store %arg4[%c1_36, %c0_37, %c0_38], %218 {strides = array<i32>} : memref<2x8x256xf32, #tpu.memory_space<vmem>>, vector<1x8x256xf32>,
    return
  }
  func.func @transform_0(%arg0: i32) -> (i32, i32, i32) {
    %c0_i32 = arith.constant 0 : i32
    %c0_i32_0 = arith.constant 0 : i32
    %c0_i32_1 = arith.constant 0 : i32
    return %arg0, %c0_i32, %c0_i32_0 : i32, i32, i32
  }
  func.func @transform_1(%arg0: i32) -> (i32, i32) {
    %c0_i32 = arith.constant 0 : i32
    %c0_i32_0 = arith.constant 0 : i32
    %c0_i32_1 = arith.constant 0 : i32
    return %c0_i32, %c0_i32_0 : i32, i32
  }
  func.func @transform_2(%arg0: i32) -> (i32, i32) {
    %c0_i32 = arith.constant 0 : i32
    %c0_i32_0 = arith.constant 0 : i32
    %c0_i32_1 = arith.constant 0 : i32
    return %c0_i32, %c0_i32_0 : i32, i32
  }
  func.func @transform_3(%arg0: i32) -> (i32, i32, i32) {
    %c0_i32 = arith.constant 0 : i32
    %c0_i32_0 = arith.constant 0 : i32
    %c0_i32_1 = arith.constant 0 : i32
    return %arg0, %c0_i32, %c0_i32_0 : i32, i32, i32
  }
}

</mosaic_0001>

<llo_original>
// kernel: tpu_custom_call.1
$region0: #{tpu_custom_call.1}
  #allocation0 [shape = 'u32[]', space=smem, size = 0x4, offset = 0x4, fixed_abs, tag = 'smem constant byte address 0x4 - core index']
  #allocation1 [shape = 'u32[144,128]{1,0:T(1,128)}', space=vmem, size = 0x12000, scoped, tag = 'internal scratch']
  %s0 = inlined_call_operand.hbm [shape: f32[2,4,256], index: 0, kind: input, shape index: {}]
  %s1 = inlined_call_operand.hbm [shape: bf16[8,100], index: 1, kind: input, shape index: {}]
  %s2 = inlined_call_operand.hbm [shape: f32[25,256], index: 2, kind: input, shape index: {}]
  %s3 = inlined_call_operand.hbm [shape: f32[2,8,256], index: 3, kind: output, shape index: {}]
  %s4 = sld [smem:[#allocation0]]
  $region34: #{tpu_custom_call.1} parent=0
    _
  %s6 = ssub.s32 1, %s4
  %s7 = scalar_select 0, %s6, %s4
  $region1: #{tpu_custom_call.1} parent=0
    #allocation2 [shape = 'u8[8192]{0}', space=vmem, size = 0x2000, scoped, tag = 'input window, operand 0, single buffered']
    #allocation3 [shape = 's32[1]{0}', space=sflag, size = 0x4, scoped, tag = 'scoped memory for tpu_custom_call.1']
    #allocation4 [shape = 's32[1]{0}', space=sflag, size = 0x4, scoped, tag = 'scoped memory for tpu_custom_call.1']
    #allocation5 [shape = 'u8[2048]{0}', space=vmem, size = 0x800, scoped, tag = 'input window, operand 1, single buffered']
    #allocation6 [shape = 's32[1]{0}', space=sflag, size = 0x4, scoped, tag = 'scoped memory for tpu_custom_call.1']
    #allocation7 [shape = 'u8[32768]{0}', space=vmem, size = 0x8000, scoped, tag = 'input window, operand 2, single buffered']
    #allocation8 [shape = 'u8[16384]{0}', space=vmem, size = 0x4000, scoped, tag = 'output window, operand 0, single buffered']
    %8 = vsyncpa [#allocation3], 0
    %9 = vsyncpa [#allocation6], 0
    %10 = vsyncpa [#allocation4], 0
    // Predicated region
    $region2: #{tpu_custom_call.1} parent=1 // pred_check
      _
    $region3: #{tpu_custom_call.1} parent=1 // pred_check_branch
      %12 = sbr.rel (0) target = $region5
    $region4: #{tpu_custom_call.1} parent=1 // pred_region
      %s14 = ssub.s32 256, 256
      %15 = vsyncadd [#allocation3], %s14
      %s16 = sshll.u32 [#allocation2], 4
      %s17 = int_to_ptr.vmem [resolvable:$true] %s16
      %22 = dma.hbm_to_vmem [thread:$0]  %s0, 256, %s17, [#allocation3], 128, 128, 8
    $region5: #{tpu_custom_call.1} parent=1 // pred_fallthru
      _
    // Predicated region
    $region6: #{tpu_custom_call.1} parent=1 // pred_check
      _
    $region7: #{tpu_custom_call.1} parent=1 // pred_check_branch
      %24 = sbr.rel (0) target = $region9
    $region8: #{tpu_custom_call.1} parent=1 // pred_region
      %s26 = ssub.s32 64, 64
      %27 = vsyncadd [#allocation6], %s26
      %s29 = sshll.u32 [#allocation5], 4
      %s30 = int_to_ptr.vmem [resolvable:$true] %s29
      %32 = dma.hbm_to_vmem [thread:$0]  %s1, 64, %s30, [#allocation6]
    $region9: #{tpu_custom_call.1} parent=1 // pred_fallthru
      _
    // Predicated region
    $region10: #{tpu_custom_call.1} parent=1 // pred_check
      _
    $region11: #{tpu_custom_call.1} parent=1 // pred_check_branch
      %34 = sbr.rel (0) target = $region13
    $region12: #{tpu_custom_call.1} parent=1 // pred_region
      %s36 = ssub.s32 1024, 1024
      %37 = vsyncadd [#allocation6], %s36
      %s38 = sshll.u32 [#allocation7], 4
      %s39 = int_to_ptr.vmem [resolvable:$true] %s38
      %44 = dma.hbm_to_vmem [thread:$0]  %s2, 1024, %s39, [#allocation6], 256, 256, 16
    $region13: #{tpu_custom_call.1} parent=1 // pred_fallthru
      _
    // Predicated region
    $region14: #{tpu_custom_call.1} parent=1 // pred_check
      _
    $region15: #{tpu_custom_call.1} parent=1 // pred_check_branch
      %46 = sbr.rel (0) target = $region17
    $region16: #{tpu_custom_call.1} parent=1 // pred_region
      %47 = dma.done [#allocation3], 256
    $region17: #{tpu_custom_call.1} parent=1 // pred_fallthru
      _
    // Predicated region
    $region18: #{tpu_custom_call.1} parent=1 // pred_check
      _
    $region19: #{tpu_custom_call.1} parent=1 // pred_check_branch
      %49 = sbr.rel (0) target = $region21
    $region20: #{tpu_custom_call.1} parent=1 // pred_region
      %50 = dma.done [#allocation6], 64
    $region21: #{tpu_custom_call.1} parent=1 // pred_fallthru
      _
    // Predicated region
    $region22: #{tpu_custom_call.1} parent=1 // pred_check
      _
    $region23: #{tpu_custom_call.1} parent=1 // pred_check_branch
      %52 = sbr.rel (0) target = $region25
    $region24: #{tpu_custom_call.1} parent=1 // pred_region
      %53 = dma.done [#allocation6], 1024
    $region25: #{tpu_custom_call.1} parent=1 // pred_fallthru
      _
    %v55 = vld [vmem:[#allocation7] sm:$0xff]
    %v56 = vld [vmem:[#allocation7 + $0x8] sm:$0xff]
    %v57 = vld [vmem:[#allocation7 + $0x10] sm:$0xff]
    %v58 = vld [vmem:[#allocation7 + $0x18] sm:$0xff]
    %v59 = vld [vmem:[#allocation7 + $0x20] sm:$0xff]
    %v60 = vld [vmem:[#allocation7 + $0x28] sm:$0xff]
    %v61 = vld [vmem:[#allocation7 + $0x30] sm:$0x1]
    %v62 = vld [vmem:[#allocation7 + $0x38] sm:$0x1]
    %v63 = vld [vmem:[#allocation2] sm:$0xff]
    %s64 = scalar_lea.vmem [#allocation2], 8
    %v65 = vld [vmem:[%s64] sm:$0xff]
    %v67 = vcombine.high %v63, %v63
    %69 = vrot.lane.b32.xlu0 %v63, 34
    %v70 = vpop.permute.xlu0 %69
    %71 = vrot.lane.b32.xlu0 %v67, 34
    %v72 = vpop.permute.xlu0 %71
    %v73 = vlaneseq
    %v74 = vand.u32 %v73, 127
    %vm75 = vcmp.lt.s32.totalorder %v74, 34
    %v76 = vsel %vm75, %v70, %v72
    %v77 = vsel %vm75, %v72, %v70
    %v78 = vlaneseq
    %v79 = vshrl.u32 %v78, 7
    %v80 = vsub.s32 0, %v79
    %v81 = vrot.slane %v55, %v80
    %v82 = vlaneseq
    %v83 = vshrl.u32 %v82, 7
    %v84 = vsub.s32 0, %v83
    %v85 = vrot.slane %v56, %v84
    %v86 = vmul.f32 %v77, %v81
    %v87 = vmul.f32 %v76, %v85
    %v89 = vcombine.high %v65, %v65
    %91 = vrot.lane.b32.xlu0 %v65, 34
    %v92 = vpop.permute.xlu0 %91
    %93 = vrot.lane.b32.xlu0 %v89, 34
    %v94 = vpop.permute.xlu0 %93
    %v95 = vsel %vm75, %v92, %v94
    %v96 = vsel %vm75, %v94, %v92
    %v97 = vmul.f32 %v96, %v81
    %v98 = vmul.f32 %v95, %v85
    %99 = vrot.lane.b32.xlu0 %v63, 33
    %v100 = vpop.permute.xlu0 %99
    %101 = vrot.lane.b32.xlu0 %v67, 33
    %v102 = vpop.permute.xlu0 %101
    %vm103 = vcmp.lt.s32.totalorder %v74, 33
    %v104 = vsel %vm103, %v100, %v102
    %v105 = vsel %vm103, %v102, %v100
    %v106 = vlaneseq
    %v107 = vshrl.u32 %v106, 7
    %v108 = vsub.s32 1, %v107
    %v109 = vrot.slane %v55, %v108
    %v110 = vlaneseq
    %v111 = vshrl.u32 %v110, 7
    %v112 = vsub.s32 1, %v111
    %v113 = vrot.slane %v56, %v112
    %v114 = vmul.f32 %v105, %v109
    %v115 = vmul.f32 %v104, %v113
    %116 = vrot.lane.b32.xlu0 %v65, 33
    %v117 = vpop.permute.xlu0 %116
    %118 = vrot.lane.b32.xlu0 %v89, 33
    %v119 = vpop.permute.xlu0 %118
    %v120 = vsel %vm103, %v117, %v119
    %v121 = vsel %vm103, %v119, %v117
    %v122 = vmul.f32 %v121, %v109
    %v123 = vmul.f32 %v120, %v113
    %124 = vrot.lane.b32.xlu0 %v63, 32
    %v125 = vpop.permute.xlu0 %124
    %126 = vrot.lane.b32.xlu0 %v67, 32
    %v127 = vpop.permute.xlu0 %126
    %vm128 = vcmp.lt.s32.totalorder %v74, 32
    %v129 = vsel %vm128, %v125, %v127
    %v130 = vsel %vm128, %v127, %v125
    %v131 = vlaneseq
    %v132 = vshrl.u32 %v131, 7
    %v133 = vsub.s32 2, %v132
    %v134 = vrot.slane %v55, %v133
    %v135 = vlaneseq
    %v136 = vshrl.u32 %v135, 7
    %v137 = vsub.s32 2, %v136
    %v138 = vrot.slane %v56, %v137
    %v139 = vmul.f32 %v130, %v134
    %v140 = vmul.f32 %v129, %v138
    %141 = vrot.lane.b32.xlu0 %v65, 32
    %v142 = vpop.permute.xlu0 %141
    %143 = vrot.lane.b32.xlu0 %v89, 32
    %v144 = vpop.permute.xlu0 %143
    %v145 = vsel %vm128, %v142, %v144
    %v146 = vsel %vm128, %v144, %v142
    %v147 = vmul.f32 %v146, %v134
    %v148 = vmul.f32 %v145, %v138
    %149 = vrot.lane.b32.xlu0 %v63, 31
    %v150 = vpop.permute.xlu0 %149
    %151 = vrot.lane.b32.xlu0 %v67, 31
    %v152 = vpop.permute.xlu0 %151
    %vm153 = vcmp.lt.s32.totalorder %v74, 31
    %v154 = vsel %vm153, %v150, %v152
    %v155 = vsel %vm153, %v152, %v150
    %v156 = vlaneseq
    %v157 = vshrl.u32 %v156, 7
    %v158 = vsub.s32 3, %v157
    %v159 = vrot.slane %v55, %v158
    %v160 = vlaneseq
    %v161 = vshrl.u32 %v160, 7
    %v162 = vsub.s32 3, %v161
    %v163 = vrot.slane %v56, %v162
    %v164 = vmul.f32 %v155, %v159
    %v165 = vmul.f32 %v154, %v163
    %166 = vrot.lane.b32.xlu0 %v65, 31
    %v167 = vpop.permute.xlu0 %166
    %168 = vrot.lane.b32.xlu0 %v89, 31
    %v169 = vpop.permute.xlu0 %168
    %v170 = vsel %vm153, %v167, %v169
    %v171 = vsel %vm153, %v169, %v167
    %v172 = vmul.f32 %v171, %v159
    %v173 = vmul.f32 %v170, %v163
    %174 = vrot.lane.b32.xlu0 %v63, 30
    %v175 = vpop.permute.xlu0 %174
    %176 = vrot.lane.b32.xlu0 %v67, 30
    %v177 = vpop.permute.xlu0 %176
    %vm178 = vcmp.lt.s32.totalorder %v74, 30
    %v179 = vsel %vm178, %v175, %v177
    %v180 = vsel %vm178, %v177, %v175
    %v181 = vlaneseq
    %v182 = vshrl.u32 %v181, 7
    %v183 = vsub.s32 4, %v182
    %v184 = vrot.slane %v55, %v183
    %v185 = vlaneseq
    %v186 = vshrl.u32 %v185, 7
    %v187 = vsub.s32 4, %v186
    %v188 = vrot.slane %v56, %v187
    %v189 = vmul.f32 %v180, %v184
    %v190 = vmul.f32 %v179, %v188
    %191 = vrot.lane.b32.xlu0 %v65, 30
    %v192 = vpop.permute.xlu0 %191
    %193 = vrot.lane.b32.xlu0 %v89, 30
    %v194 = vpop.permute.xlu0 %193
    %v195 = vsel %vm178, %v192, %v194
    %v196 = vsel %vm178, %v194, %v192
    %v197 = vmul.f32 %v196, %v184
    %v198 = vmul.f32 %v195, %v188
    %199 = vrot.lane.b32.xlu0 %v63, 18
    %v200 = vpop.permute.xlu0 %199
    %201 = vrot.lane.b32.xlu0 %v67, 18
    %v202 = vpop.permute.xlu0 %201
    %vm203 = vcmp.lt.s32.totalorder %v74, 18
    %v204 = vsel %vm203, %v200, %v202
    %v205 = vsel %vm203, %v202, %v200
    %v206 = vlaneseq
    %v207 = vshrl.u32 %v206, 7
    %v208 = vsub.s32 5, %v207
    %v209 = vrot.slane %v55, %v208
    %v210 = vlaneseq
    %v211 = vshrl.u32 %v210, 7
    %v212 = vsub.s32 5, %v211
    %v213 = vrot.slane %v56, %v212
    %v214 = vmul.f32 %v205, %v209
    %v215 = vmul.f32 %v204, %v213
    %216 = vrot.lane.b32.xlu0 %v65, 18
    %v217 = vpop.permute.xlu0 %216
    %218 = vrot.lane.b32.xlu0 %v89, 18
    %v219 = vpop.permute.xlu0 %218
    %v220 = vsel %vm203, %v217, %v219
    %v221 = vsel %vm203, %v219, %v217
    %v222 = vmul.f32 %v221, %v209
    %v223 = vmul.f32 %v220, %v213
    %224 = vrot.lane.b32.xlu0 %v63, 17
    %v225 = vpop.permute.xlu0 %224
    %226 = vrot.lane.b32.xlu0 %v67, 17
    %v227 = vpop.permute.xlu0 %226
    %vm228 = vcmp.lt.s32.totalorder %v74, 17
    %v229 = vsel %vm228, %v225, %v227
    %v230 = vsel %vm228, %v227, %v225
    %v231 = vlaneseq
    %v232 = vshrl.u32 %v231, 7
    %v233 = vsub.s32 6, %v232
    %v234 = vrot.slane %v55, %v233
    %v235 = vlaneseq
    %v236 = vshrl.u32 %v235, 7
    %v237 = vsub.s32 6, %v236
    %v238 = vrot.slane %v56, %v237
    %v239 = vmul.f32 %v230, %v234
    %v240 = vmul.f32 %v229, %v238
    %241 = vrot.lane.b32.xlu0 %v65, 17
    %v242 = vpop.permute.xlu0 %241
    %243 = vrot.lane.b32.xlu0 %v89, 17
    %v244 = vpop.permute.xlu0 %243
    %v245 = vsel %vm228, %v242, %v244
    %v246 = vsel %vm228, %v244, %v242
    %v247 = vmul.f32 %v246, %v234
    %v248 = vmul.f32 %v245, %v238
    %249 = vrot.lane.b32.xlu0 %v63, 16
    %v250 = vpop.permute.xlu0 %249
    %251 = vrot.lane.b32.xlu0 %v67, 16
    %v252 = vpop.permute.xlu0 %251
    %vm253 = vcmp.lt.s32.totalorder %v74, 16
    %v254 = vsel %vm253, %v250, %v252
    %v255 = vsel %vm253, %v252, %v250
    %v256 = vlaneseq
    %v257 = vshrl.u32 %v256, 7
    %v258 = vsub.s32 7, %v257
    %v259 = vrot.slane %v55, %v258
    %v260 = vlaneseq
    %v261 = vshrl.u32 %v260, 7
    %v262 = vsub.s32 7, %v261
    %v263 = vrot.slane %v56, %v262
    %v264 = vmul.f32 %v255, %v259
    %v265 = vmul.f32 %v254, %v263
    %266 = vrot.lane.b32.xlu0 %v65, 16
    %v267 = vpop.permute.xlu0 %266
    %268 = vrot.lane.b32.xlu0 %v89, 16
    %v269 = vpop.permute.xlu0 %268
    %v270 = vsel %vm253, %v267, %v269
    %v271 = vsel %vm253, %v269, %v267
    %v272 = vmul.f32 %v271, %v259
    %v273 = vmul.f32 %v270, %v263
    %274 = vrot.lane.b32.xlu0 %v63, 15
    %v275 = vpop.permute.xlu0 %274
    %276 = vrot.lane.b32.xlu0 %v67, 15
    %v277 = vpop.permute.xlu0 %276
    %vm278 = vcmp.lt.s32.totalorder %v74, 15
    %v279 = vsel %vm278, %v275, %v277
    %v280 = vsel %vm278, %v277, %v275
    %v281 = vlaneseq
    %v282 = vshrl.u32 %v281, 7
    %v283 = vsub.s32 0, %v282
    %v284 = vrot.slane %v57, %v283
    %v285 = vlaneseq
    %v286 = vshrl.u32 %v285, 7
    %v287 = vsub.s32 0, %v286
    %v288 = vrot.slane %v58, %v287
    %v289 = vmul.f32 %v280, %v284
    %v290 = vmul.f32 %v279, %v288
    %291 = vrot.lane.b32.xlu0 %v65, 15
    %v292 = vpop.permute.xlu0 %291
    %293 = vrot.lane.b32.xlu0 %v89, 15
    %v294 = vpop.permute.xlu0 %293
    %v295 = vsel %vm278, %v292, %v294
    %v296 = vsel %vm278, %v294, %v292
    %v297 = vmul.f32 %v296, %v284
    %v298 = vmul.f32 %v295, %v288
    %299 = vrot.lane.b32.xlu0 %v63, 14
    %v300 = vpop.permute.xlu0 %299
    %301 = vrot.lane.b32.xlu0 %v67, 14
    %v302 = vpop.permute.xlu0 %301
    %vm303 = vcmp.lt.s32.totalorder %v74, 14
    %v304 = vsel %vm303, %v300, %v302
    %v305 = vsel %vm303, %v302, %v300
    %v306 = vlaneseq
    %v307 = vshrl.u32 %v306, 7
    %v308 = vsub.s32 1, %v307
    %v309 = vrot.slane %v57, %v308
    %v310 = vlaneseq
    %v311 = vshrl.u32 %v310, 7
    %v312 = vsub.s32 1, %v311
    %v313 = vrot.slane %v58, %v312
    %v314 = vmul.f32 %v305, %v309
    %v315 = vmul.f32 %v304, %v313
    %316 = vrot.lane.b32.xlu0 %v65, 14
    %v317 = vpop.permute.xlu0 %316
    %318 = vrot.lane.b32.xlu0 %v89, 14
    %v319 = vpop.permute.xlu0 %318
    %v320 = vsel %vm303, %v317, %v319
    %v321 = vsel %vm303, %v319, %v317
    %v322 = vmul.f32 %v321, %v309
    %v323 = vmul.f32 %v320, %v313
    %324 = vrot.lane.b32.xlu0 %v63, 2
    %v325 = vpop.permute.xlu0 %324
    %326 = vrot.lane.b32.xlu0 %v67, 2
    %v327 = vpop.permute.xlu0 %326
    %vm328 = vcmp.lt.s32.totalorder %v74, 2
    %v329 = vsel %vm328, %v325, %v327
    %v330 = vsel %vm328, %v327, %v325
    %v331 = vlaneseq
    %v332 = vshrl.u32 %v331, 7
    %v333 = vsub.s32 2, %v332
    %v334 = vrot.slane %v57, %v333
    %v335 = vlaneseq
    %v336 = vshrl.u32 %v335, 7
    %v337 = vsub.s32 2, %v336
    %v338 = vrot.slane %v58, %v337
    %v339 = vmul.f32 %v330, %v334
    %v340 = vmul.f32 %v329, %v338
    %341 = vrot.lane.b32.xlu0 %v65, 2
    %v342 = vpop.permute.xlu0 %341
    %343 = vrot.lane.b32.xlu0 %v89, 2
    %v344 = vpop.permute.xlu0 %343
    %v345 = vsel %vm328, %v342, %v344
    %v346 = vsel %vm328, %v344, %v342
    %v347 = vmul.f32 %v346, %v334
    %v348 = vmul.f32 %v345, %v338
    %349 = vrot.lane.b32.xlu0 %v63, 1
    %v350 = vpop.permute.xlu0 %349
    %351 = vrot.lane.b32.xlu0 %v67, 1
    %v352 = vpop.permute.xlu0 %351
    %vm353 = vcmp.lt.s32.totalorder %v74, 1
    %v354 = vsel %vm353, %v350, %v352
    %v355 = vsel %vm353, %v352, %v350
    %v356 = vlaneseq
    %v357 = vshrl.u32 %v356, 7
    %v358 = vsub.s32 3, %v357
    %v359 = vrot.slane %v57, %v358
    %v360 = vlaneseq
    %v361 = vshrl.u32 %v360, 7
    %v362 = vsub.s32 3, %v361
    %v363 = vrot.slane %v58, %v362
    %v364 = vmul.f32 %v355, %v359
    %v365 = vmul.f32 %v354, %v363
    %366 = vrot.lane.b32.xlu0 %v65, 1
    %v367 = vpop.permute.xlu0 %366
    %368 = vrot.lane.b32.xlu0 %v89, 1
    %v369 = vpop.permute.xlu0 %368
    %v370 = vsel %vm353, %v367, %v369
    %v371 = vsel %vm353, %v369, %v367
    %v372 = vmul.f32 %v371, %v359
    %v373 = vmul.f32 %v370, %v363
    %v374 = vlaneseq
    %v375 = vshrl.u32 %v374, 7
    %v376 = vsub.s32 4, %v375
    %v377 = vrot.slane %v57, %v376
    %v378 = vlaneseq
    %v379 = vshrl.u32 %v378, 7
    %v380 = vsub.s32 4, %v379
    %v381 = vrot.slane %v58, %v380
    %v382 = vmul.f32 %v63, %v377
    %v383 = vmul.f32 %v67, %v381
    %v384 = vmul.f32 %v65, %v377
    %v385 = vmul.f32 %v89, %v381
    %386 = vrot.lane.b32.xlu0 %v63, 127
    %v387 = vpop.permute.xlu0 %386
    %388 = vrot.lane.b32.xlu0 %v67, 127
    %v389 = vpop.permute.xlu0 %388
    %vm390 = vcmp.lt.s32.totalorder %v74, 127
    %v391 = vsel %vm390, %v387, %v389
    %v392 = vsel %vm390, %v389, %v387
    %v393 = vlaneseq
    %v394 = vshrl.u32 %v393, 7
    %v395 = vsub.s32 5, %v394
    %v396 = vrot.slane %v57, %v395
    %v397 = vlaneseq
    %v398 = vshrl.u32 %v397, 7
    %v399 = vsub.s32 5, %v398
    %v400 = vrot.slane %v58, %v399
    %v401 = vmul.f32 %v391, %v396
    %v402 = vmul.f32 %v392, %v400
    %403 = vrot.lane.b32.xlu0 %v65, 127
    %v404 = vpop.permute.xlu0 %403
    %405 = vrot.lane.b32.xlu0 %v89, 127
    %v406 = vpop.permute.xlu0 %405
    %v407 = vsel %vm390, %v404, %v406
    %v408 = vsel %vm390, %v406, %v404
    %v409 = vmul.f32 %v407, %v396
    %v410 = vmul.f32 %v408, %v400
    %411 = vrot.lane.b32.xlu0 %v63, 126
    %v412 = vpop.permute.xlu0 %411
    %413 = vrot.lane.b32.xlu0 %v67, 126
    %v414 = vpop.permute.xlu0 %413
    %vm415 = vcmp.lt.s32.totalorder %v74, 126
    %v416 = vsel %vm415, %v412, %v414
    %v417 = vsel %vm415, %v414, %v412
    %v418 = vlaneseq
    %v419 = vshrl.u32 %v418, 7
    %v420 = vsub.s32 6, %v419
    %v421 = vrot.slane %v57, %v420
    %v422 = vlaneseq
    %v423 = vshrl.u32 %v422, 7
    %v424 = vsub.s32 6, %v423
    %v425 = vrot.slane %v58, %v424
    %v426 = vmul.f32 %v416, %v421
    %v427 = vmul.f32 %v417, %v425
    %428 = vrot.lane.b32.xlu0 %v65, 126
    %v429 = vpop.permute.xlu0 %428
    %430 = vrot.lane.b32.xlu0 %v89, 126
    %v431 = vpop.permute.xlu0 %430
    %v432 = vsel %vm415, %v429, %v431
    %v433 = vsel %vm415, %v431, %v429
    %v434 = vmul.f32 %v432, %v421
    %v435 = vmul.f32 %v433, %v425
    %436 = vrot.lane.b32.xlu0 %v63, 114
    %v437 = vpop.permute.xlu0 %436
    %438 = vrot.lane.b32.xlu0 %v67, 114
    %v439 = vpop.permute.xlu0 %438
    %vm440 = vcmp.lt.s32.totalorder %v74, 114
    %v441 = vsel %vm440, %v437, %v439
    %v442 = vsel %vm440, %v439, %v437
    %v443 = vlaneseq
    %v444 = vshrl.u32 %v443, 7
    %v445 = vsub.s32 7, %v444
    %v446 = vrot.slane %v57, %v445
    %v447 = vlaneseq
    %v448 = vshrl.u32 %v447, 7
    %v449 = vsub.s32 7, %v448
    %v450 = vrot.slane %v58, %v449
    %v451 = vmul.f32 %v441, %v446
    %v452 = vmul.f32 %v442, %v450
    %453 = vrot.lane.b32.xlu0 %v65, 114
    %v454 = vpop.permute.xlu0 %453
    %455 = vrot.lane.b32.xlu0 %v89, 114
    %v456 = vpop.permute.xlu0 %455
    %v457 = vsel %vm440, %v454, %v456
    %v458 = vsel %vm440, %v456, %v454
    %v459 = vmul.f32 %v457, %v446
    %v460 = vmul.f32 %v458, %v450
    %461 = vrot.lane.b32.xlu0 %v63, 113
    %v462 = vpop.permute.xlu0 %461
    %463 = vrot.lane.b32.xlu0 %v67, 113
    %v464 = vpop.permute.xlu0 %463
    %vm465 = vcmp.lt.s32.totalorder %v74, 113
    %v466 = vsel %vm465, %v462, %v464
    %v467 = vsel %vm465, %v464, %v462
    %v468 = vlaneseq
    %v469 = vshrl.u32 %v468, 7
    %v470 = vsub.s32 0, %v469
    %v471 = vrot.slane %v59, %v470
    %v472 = vlaneseq
    %v473 = vshrl.u32 %v472, 7
    %v474 = vsub.s32 0, %v473
    %v475 = vrot.slane %v60, %v474
    %v476 = vmul.f32 %v466, %v471
    %v477 = vmul.f32 %v467, %v475
    %478 = vrot.lane.b32.xlu0 %v65, 113
    %v479 = vpop.permute.xlu0 %478
    %480 = vrot.lane.b32.xlu0 %v89, 113
    %v481 = vpop.permute.xlu0 %480
    %v482 = vsel %vm465, %v479, %v481
    %v483 = vsel %vm465, %v481, %v479
    %v484 = vmul.f32 %v482, %v471
    %v485 = vmul.f32 %v483, %v475
    %486 = vrot.lane.b32.xlu0 %v63, 112
    %v487 = vpop.permute.xlu0 %486
    %488 = vrot.lane.b32.xlu0 %v67, 112
    %v489 = vpop.permute.xlu0 %488
    %vm490 = vcmp.lt.s32.totalorder %v74, 112
    %v491 = vsel %vm490, %v487, %v489
    %v492 = vsel %vm490, %v489, %v487
    %v493 = vlaneseq
    %v494 = vshrl.u32 %v493, 7
    %v495 = vsub.s32 1, %v494
    %v496 = vrot.slane %v59, %v495
    %v497 = vlaneseq
    %v498 = vshrl.u32 %v497, 7
    %v499 = vsub.s32 1, %v498
    %v500 = vrot.slane %v60, %v499
    %v501 = vmul.f32 %v491, %v496
    %v502 = vmul.f32 %v492, %v500
    %503 = vrot.lane.b32.xlu0 %v65, 112
    %v504 = vpop.permute.xlu0 %503
    %505 = vrot.lane.b32.xlu0 %v89, 112
    %v506 = vpop.permute.xlu0 %505
    %v507 = vsel %vm490, %v504, %v506
    %v508 = vsel %vm490, %v506, %v504
    %v509 = vmul.f32 %v507, %v496
    %v510 = vmul.f32 %v508, %v500
    %511 = vrot.lane.b32.xlu0 %v63, 111
    %v512 = vpop.permute.xlu0 %511
    %513 = vrot.lane.b32.xlu0 %v67, 111
    %v514 = vpop.permute.xlu0 %513
    %vm515 = vcmp.lt.s32.totalorder %v74, 111
    %v516 = vsel %vm515, %v512, %v514
    %v517 = vsel %vm515, %v514, %v512
    %v518 = vlaneseq
    %v519 = vshrl.u32 %v518, 7
    %v520 = vsub.s32 2, %v519
    %v521 = vrot.slane %v59, %v520
    %v522 = vlaneseq
    %v523 = vshrl.u32 %v522, 7
    %v524 = vsub.s32 2, %v523
    %v525 = vrot.slane %v60, %v524
    %v526 = vmul.f32 %v516, %v521
    %v527 = vmul.f32 %v517, %v525
    %528 = vrot.lane.b32.xlu0 %v65, 111
    %v529 = vpop.permute.xlu0 %528
    %530 = vrot.lane.b32.xlu0 %v89, 111
    %v531 = vpop.permute.xlu0 %530
    %v532 = vsel %vm515, %v529, %v531
    %v533 = vsel %vm515, %v531, %v529
    %v534 = vmul.f32 %v532, %v521
    %v535 = vmul.f32 %v533, %v525
    %536 = vrot.lane.b32.xlu0 %v63, 110
    %v537 = vpop.permute.xlu0 %536
    %538 = vrot.lane.b32.xlu0 %v67, 110
    %v539 = vpop.permute.xlu0 %538
    %vm540 = vcmp.lt.s32.totalorder %v74, 110
    %v541 = vsel %vm540, %v537, %v539
    %v542 = vsel %vm540, %v539, %v537
    %v543 = vlaneseq
    %v544 = vshrl.u32 %v543, 7
    %v545 = vsub.s32 3, %v544
    %v546 = vrot.slane %v59, %v545
    %v547 = vlaneseq
    %v548 = vshrl.u32 %v547, 7
    %v549 = vsub.s32 3, %v548
    %v550 = vrot.slane %v60, %v549
    %v551 = vmul.f32 %v541, %v546
    %v552 = vmul.f32 %v542, %v550
    %553 = vrot.lane.b32.xlu0 %v65, 110
    %v554 = vpop.permute.xlu0 %553
    %555 = vrot.lane.b32.xlu0 %v89, 110
    %v556 = vpop.permute.xlu0 %555
    %v557 = vsel %vm540, %v554, %v556
    %v558 = vsel %vm540, %v556, %v554
    %v559 = vmul.f32 %v557, %v546
    %v560 = vmul.f32 %v558, %v550
    %561 = vrot.lane.b32.xlu0 %v63, 98
    %v562 = vpop.permute.xlu0 %561
    %563 = vrot.lane.b32.xlu0 %v67, 98
    %v564 = vpop.permute.xlu0 %563
    %vm565 = vcmp.lt.s32.totalorder %v74, 98
    %v566 = vsel %vm565, %v562, %v564
    %v567 = vsel %vm565, %v564, %v562
    %v568 = vlaneseq
    %v569 = vshrl.u32 %v568, 7
    %v570 = vsub.s32 4, %v569
    %v571 = vrot.slane %v59, %v570
    %v572 = vlaneseq
    %v573 = vshrl.u32 %v572, 7
    %v574 = vsub.s32 4, %v573
    %v575 = vrot.slane %v60, %v574
    %v576 = vmul.f32 %v566, %v571
    %v577 = vmul.f32 %v567, %v575
    %578 = vrot.lane.b32.xlu0 %v65, 98
    %v579 = vpop.permute.xlu0 %578
    %580 = vrot.lane.b32.xlu0 %v89, 98
    %v581 = vpop.permute.xlu0 %580
    %v582 = vsel %vm565, %v579, %v581
    %v583 = vsel %vm565, %v581, %v579
    %v584 = vmul.f32 %v582, %v571
    %v585 = vmul.f32 %v583, %v575
    %586 = vrot.lane.b32.xlu0 %v63, 97
    %v587 = vpop.permute.xlu0 %586
    %588 = vrot.lane.b32.xlu0 %v67, 97
    %v589 = vpop.permute.xlu0 %588
    %vm590 = vcmp.lt.s32.totalorder %v74, 97
    %v591 = vsel %vm590, %v587, %v589
    %v592 = vsel %vm590, %v589, %v587
    %v593 = vlaneseq
    %v594 = vshrl.u32 %v593, 7
    %v595 = vsub.s32 5, %v594
    %v596 = vrot.slane %v59, %v595
    %v597 = vlaneseq
    %v598 = vshrl.u32 %v597, 7
    %v599 = vsub.s32 5, %v598
    %v600 = vrot.slane %v60, %v599
    %v601 = vmul.f32 %v591, %v596
    %v602 = vmul.f32 %v592, %v600
    %603 = vrot.lane.b32.xlu0 %v65, 97
    %v604 = vpop.permute.xlu0 %603
    %605 = vrot.lane.b32.xlu0 %v89, 97
    %v606 = vpop.permute.xlu0 %605
    %v607 = vsel %vm590, %v604, %v606
    %v608 = vsel %vm590, %v606, %v604
    %v609 = vmul.f32 %v607, %v596
    %v610 = vmul.f32 %v608, %v600
    %611 = vrot.lane.b32.xlu0 %v63, 96
    %v612 = vpop.permute.xlu0 %611
    %613 = vrot.lane.b32.xlu0 %v67, 96
    %v614 = vpop.permute.xlu0 %613
    %vm615 = vcmp.lt.s32.totalorder %v74, 96
    %v616 = vsel %vm615, %v612, %v614
    %v617 = vsel %vm615, %v614, %v612
    %v618 = vlaneseq
    %v619 = vshrl.u32 %v618, 7
    %v620 = vsub.s32 6, %v619
    %v621 = vrot.slane %v59, %v620
    %v622 = vlaneseq
    %v623 = vshrl.u32 %v622, 7
    %v624 = vsub.s32 6, %v623
    %v625 = vrot.slane %v60, %v624
    %v626 = vmul.f32 %v616, %v621
    %v627 = vmul.f32 %v617, %v625
    %628 = vrot.lane.b32.xlu0 %v65, 96
    %v629 = vpop.permute.xlu0 %628
    %630 = vrot.lane.b32.xlu0 %v89, 96
    %v631 = vpop.permute.xlu0 %630
    %v632 = vsel %vm615, %v629, %v631
    %v633 = vsel %vm615, %v631, %v629
    %v634 = vmul.f32 %v632, %v621
    %v635 = vmul.f32 %v633, %v625
    %636 = vrot.lane.b32.xlu0 %v63, 95
    %v637 = vpop.permute.xlu0 %636
    %638 = vrot.lane.b32.xlu0 %v67, 95
    %v639 = vpop.permute.xlu0 %638
    %vm640 = vcmp.lt.s32.totalorder %v74, 95
    %v641 = vsel %vm640, %v637, %v639
    %v642 = vsel %vm640, %v639, %v637
    %v643 = vlaneseq
    %v644 = vshrl.u32 %v643, 7
    %v645 = vsub.s32 7, %v644
    %v646 = vrot.slane %v59, %v645
    %v647 = vlaneseq
    %v648 = vshrl.u32 %v647, 7
    %v649 = vsub.s32 7, %v648
    %v650 = vrot.slane %v60, %v649
    %v651 = vmul.f32 %v641, %v646
    %v652 = vmul.f32 %v642, %v650
    %653 = vrot.lane.b32.xlu0 %v65, 95
    %v654 = vpop.permute.xlu0 %653
    %655 = vrot.lane.b32.xlu0 %v89, 95
    %v656 = vpop.permute.xlu0 %655
    %v657 = vsel %vm640, %v654, %v656
    %v658 = vsel %vm640, %v656, %v654
    %v659 = vmul.f32 %v657, %v646
    %v660 = vmul.f32 %v658, %v650
    %661 = vrot.lane.b32.xlu0 %v63, 94
    %v662 = vpop.permute.xlu0 %661
    %663 = vrot.lane.b32.xlu0 %v67, 94
    %v664 = vpop.permute.xlu0 %663
    %vm665 = vcmp.lt.s32.totalorder %v74, 94
    %v666 = vsel %vm665, %v662, %v664
    %v667 = vsel %vm665, %v664, %v662
    %v668 = vlaneseq
    %v669 = vshrl.u32 %v668, 7
    %v670 = vsub.s32 0, %v669
    %v671 = vrot.slane %v61, %v670
    %v672 = vlaneseq
    %v673 = vshrl.u32 %v672, 7
    %v674 = vsub.s32 0, %v673
    %v675 = vrot.slane %v62, %v674
    %v676 = vmul.f32 %v666, %v671
    %v677 = vmul.f32 %v667, %v675
    %678 = vrot.lane.b32.xlu0 %v65, 94
    %v679 = vpop.permute.xlu0 %678
    %680 = vrot.lane.b32.xlu0 %v89, 94
    %v681 = vpop.permute.xlu0 %680
    %v682 = vsel %vm665, %v679, %v681
    %v683 = vsel %vm665, %v681, %v679
    %v684 = vmul.f32 %v682, %v671
    %v685 = vmul.f32 %v683, %v675
    %v690 = vrot.slane %v114, 4
    %v691 = vrot.slane %v115, 4
    %v692 = vrot.slane %v122, 4
    %v693 = vrot.slane %v123, 4
    %v702 = vrot.slane %v164, 4
    %v703 = vrot.slane %v165, 4
    %v704 = vrot.slane %v172, 4
    %v705 = vrot.slane %v173, 4
    %v714 = vrot.slane %v214, 4
    %v715 = vrot.slane %v215, 4
    %v716 = vrot.slane %v222, 4
    %v717 = vrot.slane %v223, 4
    %v726 = vrot.slane %v264, 4
    %v727 = vrot.slane %v265, 4
    %v728 = vrot.slane %v272, 4
    %v729 = vrot.slane %v273, 4
    %v738 = vrot.slane %v314, 4
    %v739 = vrot.slane %v315, 4
    %v740 = vrot.slane %v322, 4
    %v741 = vrot.slane %v323, 4
    %v750 = vrot.slane %v364, 4
    %v751 = vrot.slane %v365, 4
    %v752 = vrot.slane %v372, 4
    %v753 = vrot.slane %v373, 4
    %v762 = vrot.slane %v401, 4
    %v763 = vrot.slane %v402, 4
    %v764 = vrot.slane %v409, 4
    %v765 = vrot.slane %v410, 4
    %v774 = vrot.slane %v451, 4
    %v775 = vrot.slane %v452, 4
    %v776 = vrot.slane %v459, 4
    %v777 = vrot.slane %v460, 4
    %vm782 = vcmask 1043456
    %v783 = vsel %vm782, %v86, %v690
    %v784 = vsel %vm782, %v87, %v691
    %v785 = vsel %vm782, %v97, %v692
    %v786 = vsel %vm782, %v98, %v693
    %v787 = vsel %vm782, %v139, %v702
    %v788 = vsel %vm782, %v140, %v703
    %v789 = vsel %vm782, %v147, %v704
    %v790 = vsel %vm782, %v148, %v705
    %v791 = vsel %vm782, %v189, %v714
    %v792 = vsel %vm782, %v190, %v715
    %v793 = vsel %vm782, %v197, %v716
    %v794 = vsel %vm782, %v198, %v717
    %v795 = vsel %vm782, %v239, %v726
    %v796 = vsel %vm782, %v240, %v727
    %v797 = vsel %vm782, %v247, %v728
    %v798 = vsel %vm782, %v248, %v729
    %v799 = vsel %vm782, %v289, %v738
    %v800 = vsel %vm782, %v290, %v739
    %v801 = vsel %vm782, %v297, %v740
    %v802 = vsel %vm782, %v298, %v741
    %v803 = vsel %vm782, %v339, %v750
    %v804 = vsel %vm782, %v340, %v751
    %v805 = vsel %vm782, %v347, %v752
    %v806 = vsel %vm782, %v348, %v753
    %v807 = vsel %vm782, %v382, %v762
    %v808 = vsel %vm782, %v383, %v763
    %v809 = vsel %vm782, %v384, %v764
    %v810 = vsel %vm782, %v385, %v765
    %v811 = vsel %vm782, %v426, %v774
    %v812 = vsel %vm782, %v427, %v775
    %v813 = vsel %vm782, %v434, %v776
    %v814 = vsel %vm782, %v435, %v777
    %v819 = vrot.slane %v501, 4
    %v820 = vrot.slane %v502, 4
    %v821 = vrot.slane %v509, 4
    %v822 = vrot.slane %v510, 4
    %v831 = vrot.slane %v551, 4
    %v832 = vrot.slane %v552, 4
    %v833 = vrot.slane %v559, 4
    %v834 = vrot.slane %v560, 4
    %v843 = vrot.slane %v601, 4
    %v844 = vrot.slane %v602, 4
    %v845 = vrot.slane %v609, 4
    %v846 = vrot.slane %v610, 4
    %v855 = vrot.slane %v651, 4
    %v856 = vrot.slane %v652, 4
    %v857 = vrot.slane %v659, 4
    %v858 = vrot.slane %v660, 4
    %v863 = vsel %vm782, %v476, %v819
    %v864 = vsel %vm782, %v477, %v820
    %v865 = vsel %vm782, %v484, %v821
    %v866 = vsel %vm782, %v485, %v822
    %v867 = vsel %vm782, %v526, %v831
    %v868 = vsel %vm782, %v527, %v832
    %v869 = vsel %vm782, %v534, %v833
    %v870 = vsel %vm782, %v535, %v834
    %v871 = vsel %vm782, %v576, %v843
    %v872 = vsel %vm782, %v577, %v844
    %v873 = vsel %vm782, %v584, %v845
    %v874 = vsel %vm782, %v585, %v846
    %v875 = vsel %vm782, %v626, %v855
    %v876 = vsel %vm782, %v627, %v856
    %v877 = vsel %vm782, %v634, %v857
    %v878 = vsel %vm782, %v635, %v858
    %v879 = vpack.c.bf16 %v787, %v783
    %v880 = vpack.c.bf16 %v788, %v784
    %v881 = vpack.c.bf16 %v789, %v785
    %v882 = vpack.c.bf16 %v790, %v786
    %v883 = vpack.c.bf16 %v795, %v791
    %v884 = vpack.c.bf16 %v796, %v792
    %v885 = vpack.c.bf16 %v797, %v793
    %v886 = vpack.c.bf16 %v798, %v794
    %v887 = vpack.c.bf16 %v803, %v799
    %v888 = vpack.c.bf16 %v804, %v800
    %v889 = vpack.c.bf16 %v805, %v801
    %v890 = vpack.c.bf16 %v806, %v802
    %v891 = vpack.c.bf16 %v811, %v807
    %v892 = vpack.c.bf16 %v812, %v808
    %v893 = vpack.c.bf16 %v813, %v809
    %v894 = vpack.c.bf16 %v814, %v810
    %v895 = vpack.c.bf16 %v867, %v863
    %v896 = vpack.c.bf16 %v868, %v864
    %v897 = vpack.c.bf16 %v869, %v865
    %v898 = vpack.c.bf16 %v870, %v866
    %v899 = vpack.c.bf16 %v875, %v871
    %v900 = vpack.c.bf16 %v876, %v872
    %v901 = vpack.c.bf16 %v877, %v873
    %v902 = vpack.c.bf16 %v878, %v874
    %v903 = vpack.c.bf16 %v676, %v676
    %v904 = vpack.c.bf16 %v677, %v677
    %v905 = vpack.c.bf16 %v684, %v684
    %v906 = vpack.c.bf16 %v685, %v685
    %v907 = vld [vmem:[#allocation5] sm:$0xf]
    %vm908 = vcmask 818176
    %v910 = vsel %vm908, %v907, 0
    %vm912 = vcmask 1041408
    %v914 = vsel %vm912, %v903, 0
    %v917 = vsel %vm912, %v904, 0
    %v920 = vsel %vm912, %v905, 0
    %v923 = vsel %vm912, %v906, 0
    %925 = vmatprep.subr.bf16.mxu0 0
    %926 = vmatpush1.bf16.msra.mxu0 0
    %927 = vmatprep.subr.bf16.mxu0 %v917
    %928 = vmatpush1.bf16.msra.mxu0 %v914
    %929 = vmatprep.subr.bf16.mxu0 %v900
    %930 = vmatpush1.bf16.msra.mxu0 %v899
    %931 = vmatprep.subr.bf16.mxu0 %v896
    %932 = vmatpush1.bf16.msra.mxu0 %v895
    %933 = vmatprep.subr.bf16.mxu0 %v892
    %934 = vmatpush1.bf16.msra.mxu0 %v891
    %935 = vmatprep.subr.bf16.mxu0 %v888
    %936 = vmatpush1.bf16.msra.mxu0 %v887
    %937 = vmatprep.subr.bf16.mxu0 %v884
    %938 = vmatpush1.bf16.msra.mxu0 %v883
    %939 = vmatprep.subr.bf16.mxu0 %v880
    %940 = vmatpush1.bf16.msra.mxu0 %v879
    %941 = vmatprep.subr.bf16.mxu0 0
    %942 = vmatpush2.bf16.msra.mxu0 0
    %943 = vmatprep.subr.bf16.mxu0 0
    %944 = vmatpush2.bf16.msra.mxu0 0
    %945 = vmatprep.subr.bf16.mxu0 0
    %946 = vmatpush2.bf16.msra.mxu0 0
    %947 = vmatprep.subr.bf16.mxu0 0
    %948 = vmatpush2.bf16.msra.mxu0 0
    %949 = vmatprep.subr.bf16.mxu0 0
    %950 = vmatpush2.bf16.msra.mxu0 0
    %951 = vmatprep.subr.bf16.mxu0 0
    %952 = vmatpush2.bf16.msra.mxu0 0
    %953 = vmatprep.subr.bf16.mxu0 0
    %954 = vmatpush2.bf16.msra.mxu0 0
    %955 = vmatprep.subr.bf16.mxu0 0
    %956 = vmatpush2.bf16.msra.mxu0 0
    %957 = vmatprep.mubr.bf16.mxu0 0
    %958 = vmatmul.mubr.bf16.gmra.mxu0 %v910
    %v959 = vpop.f32.mrf.mxu0
    %v960 = vadd.f32 0.0, %v959
    %v961 = vpop.f32.mrf.mxu0
    %v962 = vadd.f32 0.0, %v961
    %v963 = vpop.f32.mrf.mxu0
    %v964 = vpop.f32.mrf.mxu0
    %965 = vdwg.mxu0
    %966 = vmatprep.subr.bf16.mxu0 0
    %967 = vmatpush1.bf16.msra.mxu0 0
    %968 = vmatprep.subr.bf16.mxu0 %v923
    %969 = vmatpush1.bf16.msra.mxu0 %v920
    %970 = vmatprep.subr.bf16.mxu0 %v902
    %971 = vmatpush1.bf16.msra.mxu0 %v901
    %972 = vmatprep.subr.bf16.mxu0 %v898
    %973 = vmatpush1.bf16.msra.mxu0 %v897
    %974 = vmatprep.subr.bf16.mxu0 %v894
    %975 = vmatpush1.bf16.msra.mxu0 %v893
    %976 = vmatprep.subr.bf16.mxu0 %v890
    %977 = vmatpush1.bf16.msra.mxu0 %v889
    %978 = vmatprep.subr.bf16.mxu0 %v886
    %979 = vmatpush1.bf16.msra.mxu0 %v885
    %980 = vmatprep.subr.bf16.mxu0 %v882
    %981 = vmatpush1.bf16.msra.mxu0 %v881
    %982 = vmatprep.subr.bf16.mxu0 0
    %983 = vmatpush2.bf16.msra.mxu0 0
    %984 = vmatprep.subr.bf16.mxu0 0
    %985 = vmatpush2.bf16.msra.mxu0 0
    %986 = vmatprep.subr.bf16.mxu0 0
    %987 = vmatpush2.bf16.msra.mxu0 0
    %988 = vmatprep.subr.bf16.mxu0 0
    %989 = vmatpush2.bf16.msra.mxu0 0
    %990 = vmatprep.subr.bf16.mxu0 0
    %991 = vmatpush2.bf16.msra.mxu0 0
    %992 = vmatprep.subr.bf16.mxu0 0
    %993 = vmatpush2.bf16.msra.mxu0 0
    %994 = vmatprep.subr.bf16.mxu0 0
    %995 = vmatpush2.bf16.msra.mxu0 0
    %996 = vmatprep.subr.bf16.mxu0 0
    %997 = vmatpush2.bf16.msra.mxu0 0
    %998 = vmatprep.mubr.bf16.mxu0 0
    %999 = vmatmul.mubr.bf16.gmra.mxu0 %v910
    %v1000 = vpop.f32.mrf.mxu0
    %v1001 = vadd.f32 0.0, %v1000
    %v1002 = vpop.f32.mrf.mxu0
    %v1003 = vadd.f32 0.0, %v1002
    %v1004 = vpop.f32.mrf.mxu0
    %v1005 = vpop.f32.mrf.mxu0
    %1006 = vdwg.mxu0
    %1007 = vst [vmem:[#allocation8] sm:$0xff] %v960
    %1008 = vst [vmem:[#allocation8 + $0x8] sm:$0xff] %v962
    %s1009 = scalar_lea.vmem [#allocation8], 16
    %1010 = vst [vmem:[%s1009] sm:$0xff] %v1001
    %1011 = vst [vmem:[%s1009 + $0x8] sm:$0xff] %v1003
    // Predicated region
    $region26: #{tpu_custom_call.1} parent=1 // pred_check
      _
    $region27: #{tpu_custom_call.1} parent=1 // pred_check_branch
      %1013 = sbr.rel (0) target = $region29
    $region28: #{tpu_custom_call.1} parent=1 // pred_region
      %s1015 = ssub.s32 512, 512
      %1016 = vsyncadd [#allocation4], %s1015
      %s1017 = sshll.u32 [#allocation8], 4
      %s1018 = int_to_ptr.vmem [resolvable:$true] %s1017
      %1023 = dma.vmem_to_hbm [thread:$0]  %s1018, 512, %s3, [#allocation4], 256, 256, 16
    $region29: #{tpu_custom_call.1} parent=1 // pred_fallthru
      _
    // Predicated region
    $region30: #{tpu_custom_call.1} parent=1 // pred_check
      _
    $region31: #{tpu_custom_call.1} parent=1 // pred_check_branch
      %1025 = sbr.rel (0) target = $region33
    $region32: #{tpu_custom_call.1} parent=1 // pred_region
      %1026 = dma.done [#allocation4], 512
    $region33: #{tpu_custom_call.1} parent=1 // pred_fallthru
      _
    %1027 = vsyncpa [#allocation3], 1
    %1028 = vsyncpa [#allocation6], 1
    %1029 = vsyncpa [#allocation4], 1

</llo_original>
